<compile_context>
chip_gen: v6e
topology: v6e:2x2x1
jax: 0.10.0
libtpu: 0.0.40
codegen_flags: <defaults>
</compile_context>

<pallas_src>
import functools

import jax
import jax.numpy as jnp
from jax.experimental import pallas as pl
from jax.experimental.pallas import tpu as pltpu


# ----------------------------- Pallas kernels ------------------------------- #
def _stage1_kernel(lo_ref, w1_ref, b1_ref, u_ref):
    # UpSample's 1x1 conv (BN1 scale pre-folded into w1) + shift + ReLU,
    # evaluated at LOW resolution.  Channels on sublanes, pixels on lanes.
    u = jnp.dot(w1_ref[...], lo_ref[...], preferred_element_type=jnp.float32)
    u_ref[...] = jnp.maximum(u + b1_ref[...], 0.0)


def _stage2_kernel(u_ref, hi_ref, w2a_ref, w2b_ref, b2_ref, out_ref):
    # conv_normed on concat(up, hi):  cat(u,hi) @ W2 == W2a^T @ u + W2b^T @ hi
    # (BN2 scale pre-folded into w2a/w2b).  Lane-dense (pixel-major) output store.
    y = jnp.dot(w2a_ref[...], u_ref[...], preferred_element_type=jnp.float32)
    y = y + jnp.dot(w2b_ref[...], hi_ref[...], preferred_element_type=jnp.float32)
    out_ref[...] = y + b2_ref[...]
    # TODO(synk): could fuse the two dots via a VMEM concat scratch (K=16 underfills
    # the MXU), but the kernel is memory-bound so the win is negligible.


# ------------------------------ Wrapper -------------------------------------- #
def _fold_bn(gamma, beta, mean, var, eps=1e-5):
    scale = gamma / jnp.sqrt(var + eps)
    shift = beta - mean * scale
    return scale, shift


def _pick_tile(n_pix, per_pix_bytes, requested):
    """Pixel (lane) tile: a multiple of 128, or the full pixel extent.
    Double-buffered activation footprint is kept under ~24 MiB so the default
    scoped-VMEM limit is safe on every generation (v7x: 64 MiB physical)."""
    budget = 24 * 1024 * 1024
    max_by_vmem = max(128, budget // (2 * per_pix_bytes))
    tile = max(128, (min(requested, max_by_vmem) // 128) * 128)
    return n_pix if n_pix <= tile else tile


@functools.partial(jax.jit, static_argnames=("tile_pix",))
def combine_layers_forward(layer_lo, layer_hi, params, tile_pix=1024):
    """layer_lo: (B, C_lo, H/2, W/2) NCHW; layer_hi: (B, C_hi, H, W) NCHW."""
    w1, w2 = params["w1"], params["w2"]            # (C_lo, C_mid), (C_mid+C_hi, C_out)
    s1, b1 = _fold_bn(params["g1"], params["be1"], params["m1"], params["v1"])
    s2, b2 = _fold_bn(params["g2"], params["be2"], params["m2"], params["v2"])

    C_lo, C_mid = w1.shape
    C_out = w2.shape[1]
    B, C_hi, H, W = layer_hi.shape
    _, _, Hh, Wh = layer_lo.shape
    assert (H, W) == (2 * Hh, 2 * Wh), "layer_hi must be 2x the spatial size of layer_lo"

    # Fold BN scales into transposed 1x1-conv weights -> kernels are matmul + bias.
    # (C_out, C_in) orientation puts channels on sublanes, pixels on lanes.
    w1t = (w1 * s1[None, :]).T                      # (C_mid, C_lo)
    w2at = (w2[:C_mid] * s2[None, :]).T             # (C_out, C_mid)
    w2bt = (w2[C_mid:] * s2[None, :]).T             # (C_out, C_hi)
    b1c = b1.reshape(C_mid, 1)
    b2c = b2.reshape(C_out, 1)

    # NCHW-native flattening: free reshapes, no transposes.
    lo_flat = layer_lo.reshape(B, C_lo, Hh * Wh)
    hi_flat = layer_hi.reshape(B, C_hi, H * W)

    f32 = jnp.dtype(jnp.float32).itemsize

    # ---- Stage 1 at LOW resolution (conv1 + BN1 + ReLU commute with nearest x2) ----
    n_lo = Hh * Wh
    t_lo = _pick_tile(n_lo, (C_lo + C_mid) * f32, tile_pix)
    u_lo = pl.pallas_call(
        _stage1_kernel,
        out_shape=jax.ShapeDtypeStruct((B, C_mid, n_lo), jnp.float32),
        grid_spec=pltpu.PrefetchScalarGridSpec(
            num_scalar_prefetch=0,
            grid=(B, pl.cdiv(n_lo, t_lo)),
            in_specs=[
                pl.BlockSpec((None, C_lo, t_lo), lambda b, t: (b, 0, t)),
                pl.BlockSpec((C_mid, C_lo), lambda b, t: (0, 0)),
                pl.BlockSpec((C_mid, 1), lambda b, t: (0, 0)),
            ],
            out_specs=pl.BlockSpec((None, C_mid, t_lo), lambda b, t: (b, 0, t)),
        ),
        compiler_params=pltpu.CompilerParams(
            dimension_semantics=("parallel", "parallel")),
    )(lo_flat, w1t, b1c)

    # Nearest x2 broadcast of the narrow stage-1 activation (pure data movement,
    # half the channels of the old upsample(lo) materialization).
    # TODO(synk): fuse this broadcast into stage 2 (needs an in-kernel 2x
    # lane/sublane interleave, which Mosaic reshapes do not express cleanly).
    u_up = u_lo.reshape(B, C_mid, Hh, Wh)
    u_up = jnp.repeat(jnp.repeat(u_up, 2, axis=2), 2, axis=3).reshape(B, C_mid, H * W)

    # ---- Stage 2 at full resolution: W2a^T @ u + W2b^T @ hi + b2 -------------------
    n_hi = H * W
    t_hi = _pick_tile(n_hi, (C_mid + C_hi + C_out) * f32, tile_pix)
    out_flat = pl.pallas_call(
        _stage2_kernel,
        out_shape=jax.ShapeDtypeStruct((B, C_out, n_hi), jnp.float32),
        grid_spec=pltpu.PrefetchScalarGridSpec(
            num_scalar_prefetch=0,
            grid=(B, pl.cdiv(n_hi, t_hi)),
            in_specs=[
                pl.BlockSpec((None, C_mid, t_hi), lambda b, t: (b, 0, t)),
                pl.BlockSpec((None, C_hi, t_hi), lambda b, t: (b, 0, t)),
                pl.BlockSpec((C_out, C_mid), lambda b, t: (0, 0)),
                pl.BlockSpec((C_out, C_hi), lambda b, t: (0, 0)),
                pl.BlockSpec((C_out, 1), lambda b, t: (0, 0)),
            ],
            out_specs=pl.BlockSpec((None, C_out, t_hi), lambda b, t: (b, 0, t)),
        ),
        compiler_params=pltpu.CompilerParams(
            dimension_semantics=("parallel", "parallel")),
    )(u_up, hi_flat, w2at, w2bt, b2c)

    return out_flat.reshape(B, C_out, H, W)          # already NCHW: free reshape


# --------------------------- Pure-JAX reference ------------------------------ #
def _reference(layer_lo, layer_hi, params):
    s1, b1 = _fold_bn(params["g1"], params["be1"], params["m1"], params["v1"])
    s2, b2 = _fold_bn(params["g2"], params["be2"], params["m2"], params["v2"])
    up = jnp.repeat(jnp.repeat(layer_lo, 2, axis=2), 2, axis=3)
    u = jnp.einsum("bchw,co->bohw", up, params["w1"])
    u = u * s1[None, :, None, None] + b1[None, :, None, None]
    u = jnp.maximum(u, 0.0)
    cat = jnp.concatenate([u, layer_hi], axis=1)
    y = jnp.einsum("bchw,co->bohw", cat, params["w2"])
    return y * s2[None, :, None, None] + b2[None, :, None, None]


# ------------------------------- Params / main -------------------------------- #
def _init_params(key, c_lo, c_hi, nfilters):
    c_mid = nfilters // 2          # UpSample output channels
    c_cat = c_mid + c_hi
    ks = jax.random.split(key, 10)
    p = {
        # 1x1 conv weights stored in matmul layout (C_in, C_out); equals the
        # transpose of PyTorch's (C_out, C_in, 1, 1) kernel. bias=False (pre-norm conv).
        "w1": jax.random.normal(ks[0], (c_lo, c_mid), jnp.float32) * 0.1,
        "w2": jax.random.normal(ks[1], (c_cat, nfilters), jnp.float32) * 0.1,
        # BatchNorm (inference) parameters for the two normed convolutions.
        "g1": jax.random.uniform(ks[2], (c_mid,), jnp.float32, 0.5, 1.5),
        "be1": jax.random.normal(ks[3], (c_mid,), jnp.float32) * 0.1,
        "m1": jax.random.normal(ks[4], (c_mid,), jnp.float32) * 0.1,
        "v1": jax.random.uniform(ks[5], (c_mid,), jnp.float32, 0.5, 1.5),
        "g2": jax.random.uniform(ks[6], (nfilters,), jnp.float32, 0.5, 1.5),
        "be2": jax.random.normal(ks[7], (nfilters,), jnp.float32) * 0.1,
        "m2": jax.random.normal(ks[8], (nfilters,), jnp.float32) * 0.1,
        "v2": jax.random.uniform(ks[9], (nfilters,), jnp.float32, 0.5, 1.5),
    }
    return p
    # TODO(synk): training-mode BatchNorm (batch statistics) not implemented; eval-mode only.


if __name__ == "__main__":
    key = jax.random.PRNGKey(0)
    k_lo, k_hi, k_p = jax.random.split(key, 3)

    nfilters = 32
    B, H, W = 2, 16, 16
    C_lo, C_hi = nfilters, nfilters // 2

    layer_lo = jax.random.normal(k_lo, (B, C_lo, H // 2, W // 2), jnp.float32)
    layer_hi = jax.random.normal(k_hi, (B, C_hi, H, W), jnp.float32)
    params = _init_params(k_p, C_lo, C_hi, nfilters)

    out = combine_layers_forward(layer_lo, layer_hi, params)
    out = jax.block_until_ready(out)

    ref = _reference(layer_lo, layer_hi, params)
    assert out.shape == (B, nfilters, H, W), out.shape
    err = float(jnp.max(jnp.abs(out - ref)))
    assert jnp.allclose(out, ref, atol=1e-4, rtol=1e-4), err

    print("KERNEL_OK")
</pallas_src>

<mosaic_0001>
module attributes {stable_mosaic.version = 11 : i64} {
  func.func @_stage1_kernel(%arg0: i32, %arg1: i32, %arg2: memref<1x32x64xf32, #tpu.memory_space<vmem>>, %arg3: memref<16x32xf32, #tpu.memory_space<vmem>>, %arg4: memref<16x1xf32, #tpu.memory_space<vmem>>, %arg5: memref<1x16x64xf32, #tpu.memory_space<vmem>>) attributes {dimension_semantics = [#tpu.dimension_semantics<parallel>, #tpu.dimension_semantics<parallel>], iteration_bounds = array<i64: 2, 1>, scalar_prefetch = 0 : i64, scratch_operands = 0 : i64, tpu.core_type = #tpu.core_type<tc>, window_params = [{transform_indices = @transform_0, window_bounds = array<i64: 1, 32, 64>}, {pipeline_mode = #tpu.pipeline_mode<synchronous>, transform_indices = @transform_1, window_bounds = array<i64: 16, 32>}, {pipeline_mode = #tpu.pipeline_mode<synchronous>, transform_indices = @transform_2, window_bounds = array<i64: 16, 1>}, {transform_indices = @transform_3, window_bounds = array<i64: 1, 16, 64>}]} {
    %c0 = arith.constant 0 : index
    %c0_0 = arith.constant 0 : index
    %0 = vector.load %arg3[%c0, %c0_0] : memref<16x32xf32, #tpu.memory_space<vmem>>, vector<16x32xf32>
    %c0_1 = arith.constant 0 : index
    %c0_2 = arith.constant 0 : index
    %c0_3 = arith.constant 0 : index
    %1 = vector.load %arg2[%c0_1, %c0_2, %c0_3] : memref<1x32x64xf32, #tpu.memory_space<vmem>>, vector<1x32x64xf32>
    %2 = vector.shape_cast %1 : vector<1x32x64xf32> to vector<32x64xf32>
    %cst = arith.constant dense<0.000000e+00> : vector<16x64xf32>
    %3 = tpu.matmul %0, %2, %cst {dimension_numbers = #tpu.dot_dimension_numbers<[1], [0], [0], [1], [0, 0, 1, 1], [], []>} : vector<16x32xf32>, vector<32x64xf32>, vector<16x64xf32> -> vector<16x64xf32>
    %c0_4 = arith.constant 0 : index
    %c0_5 = arith.constant 0 : index
    %4 = vector.load %arg4[%c0_4, %c0_5] : memref<16x1xf32, #tpu.memory_space<vmem>>, vector<16x1xf32>
    %5 = vector.broadcast %4 : vector<16x1xf32> to vector<16x64xf32>
    %6 = arith.addf %3, %5 : vector<16x64xf32>
    %cst_6 = arith.constant 0.000000e+00 : f32
    %7 = vector.broadcast %cst_6 : f32 to vector<16x64xf32>
    %8 = arith.maximumf %6, %7 : vector<16x64xf32>
    %c0_7 = arith.constant 0 : index
    %c0_8 = arith.constant 0 : index
    %c0_9 = arith.constant 0 : index
    %9 = vector.load %arg5[%c0_7, %c0_8, %c0_9] : memref<1x16x64xf32, #tpu.memory_space<vmem>>, vector<1x16x64xf32>
    %10 = vector.shape_cast %9 : vector<1x16x64xf32> to vector<16x64xf32>
    %11 = vector.shape_cast %8 : vector<16x64xf32> to vector<1x16x64xf32>
    tpu.vector_store %arg5[%c0_7, %c0_8, %c0_9], %11 {strides = array<i32>} : memref<1x16x64xf32, #tpu.memory_space<vmem>>, vector<1x16x64xf32>,
    return
  }
  func.func @transform_0(%arg0: i32, %arg1: i32) -> (i32, i32, i32) {
    %c0_i32 = arith.constant 0 : i32
    %c0_i32_0 = arith.constant 0 : i32
    return %arg0, %c0_i32, %arg1 : i32, i32, i32
  }
  func.func @transform_1(%arg0: i32, %arg1: i32) -> (i32, i32) {
    %c0_i32 = arith.constant 0 : i32
    %c0_i32_0 = arith.constant 0 : i32
    %c0_i32_1 = arith.constant 0 : i32
    return %c0_i32, %c0_i32_0 : i32, i32
  }
  func.func @transform_2(%arg0: i32, %arg1: i32) -> (i32, i32) {
    %c0_i32 = arith.constant 0 : i32
    %c0_i32_0 = arith.constant 0 : i32
    %c0_i32_1 = arith.constant 0 : i32
    return %c0_i32, %c0_i32_0 : i32, i32
  }
  func.func @transform_3(%arg0: i32, %arg1: i32) -> (i32, i32, i32) {
    %c0_i32 = arith.constant 0 : i32
    %c0_i32_0 = arith.constant 0 : i32
    return %arg0, %c0_i32, %arg1 : i32, i32, i32
  }
}

module attributes {stable_mosaic.version = 11 : i64} {
  func.func @_stage2_kernel(%arg0: i32, %arg1: i32, %arg2: memref<1x16x256xf32, #tpu.memory_space<vmem>>, %arg3: memref<1x16x256xf32, #tpu.memory_space<vmem>>, %arg4: memref<32x16xf32, #tpu.memory_space<vmem>>, %arg5: memref<32x16xf32, #tpu.memory_space<vmem>>, %arg6: memref<32x1xf32, #tpu.memory_space<vmem>>, %arg7: memref<1x32x256xf32, #tpu.memory_space<vmem>>) attributes {dimension_semantics = [#tpu.dimension_semantics<parallel>, #tpu.dimension_semantics<parallel>], iteration_bounds = array<i64: 2, 1>, scalar_prefetch = 0 : i64, scratch_operands = 0 : i64, tpu.core_type = #tpu.core_type<tc>, window_params = [{transform_indices = @transform_0, window_bounds = array<i64: 1, 16, 256>}, {transform_indices = @transform_1, window_bounds = array<i64: 1, 16, 256>}, {pipeline_mode = #tpu.pipeline_mode<synchronous>, transform_indices = @transform_2, window_bounds = array<i64: 32, 16>}, {pipeline_mode = #tpu.pipeline_mode<synchronous>, transform_indices = @transform_3, window_bounds = array<i64: 32, 16>}, {pipeline_mode = #tpu.pipeline_mode<synchronous>, transform_indices = @transform_4, window_bounds = array<i64: 32, 1>}, {transform_indices = @transform_5, window_bounds = array<i64: 1, 32, 256>}]} {
    %c0 = arith.constant 0 : index
    %c0_0 = arith.constant 0 : index
    %0 = vector.load %arg4[%c0, %c0_0] : memref<32x16xf32, #tpu.memory_space<vmem>>, vector<32x16xf32>
    %c0_1 = arith.constant 0 : index
    %c0_2 = arith.constant 0 : index
    %c0_3 = arith.constant 0 : index
    %1 = vector.load %arg2[%c0_1, %c0_2, %c0_3] : memref<1x16x256xf32, #tpu.memory_space<vmem>>, vector<1x16x256xf32>
    %2 = vector.shape_cast %1 : vector<1x16x256xf32> to vector<16x256xf32>
    %cst = arith.constant dense<0.000000e+00> : vector<32x256xf32>
    %3 = tpu.matmul %0, %2, %cst {dimension_numbers = #tpu.dot_dimension_numbers<[1], [0], [0], [1], [0, 0, 1, 1], [], []>} : vector<32x16xf32>, vector<16x256xf32>, vector<32x256xf32> -> vector<32x256xf32>
    %c0_4 = arith.constant 0 : index
    %c0_5 = arith.constant 0 : index
    %4 = vector.load %arg5[%c0_4, %c0_5] : memref<32x16xf32, #tpu.memory_space<vmem>>, vector<32x16xf32>
    %c0_6 = arith.constant 0 : index
    %c0_7 = arith.constant 0 : index
    %c0_8 = arith.constant 0 : index
    %5 = vector.load %arg3[%c0_6, %c0_7, %c0_8] : memref<1x16x256xf32, #tpu.memory_space<vmem>>, vector<1x16x256xf32>
    %6 = vector.shape_cast %5 : vector<1x16x256xf32> to vector<16x256xf32>
    %cst_9 = arith.constant dense<0.000000e+00> : vector<32x256xf32>
    %7 = tpu.matmul %4, %6, %cst_9 {dimension_numbers = #tpu.dot_dimension_numbers<[1], [0], [0], [1], [0, 0, 1, 1], [], []>} : vector<32x16xf32>, vector<16x256xf32>, vector<32x256xf32> -> vector<32x256xf32>
    %8 = arith.addf %3, %7 : vector<32x256xf32>
    %c0_10 = arith.constant 0 : index
    %c0_11 = arith.constant 0 : index
    %9 = vector.load %arg6[%c0_10, %c0_11] : memref<32x1xf32, #tpu.memory_space<vmem>>, vector<32x1xf32>
    %10 = vector.broadcast %9 : vector<32x1xf32> to vector<32x256xf32>
    %11 = arith.addf %8, %10 : vector<32x256xf32>
    %c0_12 = arith.constant 0 : index
    %c0_13 = arith.constant 0 : index
    %c0_14 = arith.constant 0 : index
    %12 = vector.load %arg7[%c0_12, %c0_13, %c0_14] : memref<1x32x256xf32, #tpu.memory_space<vmem>>, vector<1x32x256xf32>
    %13 = vector.shape_cast %12 : vector<1x32x256xf32> to vector<32x256xf32>
    %14 = vector.shape_cast %11 : vector<32x256xf32> to vector<1x32x256xf32>
    tpu.vector_store %arg7[%c0_12, %c0_13, %c0_14], %14 {strides = array<i32>} : memref<1x32x256xf32, #tpu.memory_space<vmem>>, vector<1x32x256xf32>,
    return
  }
  func.func @transform_0(%arg0: i32, %arg1: i32) -> (i32, i32, i32) {
    %c0_i32 = arith.constant 0 : i32
    %c0_i32_0 = arith.constant 0 : i32
    return %arg0, %c0_i32, %arg1 : i32, i32, i32
  }
  func.func @transform_1(%arg0: i32, %arg1: i32) -> (i32, i32, i32) {
    %c0_i32 = arith.constant 0 : i32
    %c0_i32_0 = arith.constant 0 : i32
    return %arg0, %c0_i32, %arg1 : i32, i32, i32
  }
  func.func @transform_2(%arg0: i32, %arg1: i32) -> (i32, i32) {
    %c0_i32 = arith.constant 0 : i32
    %c0_i32_0 = arith.constant 0 : i32
    %c0_i32_1 = arith.constant 0 : i32
    return %c0_i32, %c0_i32_0 : i32, i32
  }
  func.func @transform_3(%arg0: i32, %arg1: i32) -> (i32, i32) {
    %c0_i32 = arith.constant 0 : i32
    %c0_i32_0 = arith.constant 0 : i32
    %c0_i32_1 = arith.constant 0 : i32
    return %c0_i32, %c0_i32_0 : i32, i32
  }
  func.func @transform_4(%arg0: i32, %arg1: i32) -> (i32, i32) {
    %c0_i32 = arith.constant 0 : i32
    %c0_i32_0 = arith.constant 0 : i32
    %c0_i32_1 = arith.constant 0 : i32
    return %c0_i32, %c0_i32_0 : i32, i32
  }
  func.func @transform_5(%arg0: i32, %arg1: i32) -> (i32, i32, i32) {
    %c0_i32 = arith.constant 0 : i32
    %c0_i32_0 = arith.constant 0 : i32
    return %arg0, %c0_i32, %arg1 : i32, i32, i32
  }
}

</mosaic_0001>

<llo_original>
// kernel: combine_layers_forward.2
$region0: #{combine_layers_forward.2}
  #allocation0 [shape = 'u32[]', space=smem, size = 0x4, offset = 0x4, fixed_abs, tag = 'smem constant byte address 0x4 - core index']
  #allocation1 [shape = 'u32[144,128]{1,0:T(1,128)}', space=vmem, size = 0x12000, scoped, tag = 'internal scratch']
  %s0 = inlined_call_operand.vmem [shape: f32[2,32,64], index: 0, kind: input, shape index: {}]
  %s1 = inlined_call_operand.vmem [shape: f32[16,32], index: 1, kind: input, shape index: {}]
  %s2 = inlined_call_operand.vmem [shape: f32[16,1], index: 2, kind: input, shape index: {}]
  %s3 = inlined_call_operand.vmem [shape: f32[2,16,64], index: 3, kind: output, shape index: {}]
  %s4 = sld [smem:[#allocation0]]
  $region45: #{combine_layers_forward.2} parent=0
    _
  %s6 = ssub.s32 1, %s4
  %s7 = scalar_select 0, %s6, %s4
  loop: start=0, step=1, limit=4
  $region2: #{combine_layers_forward.2} parent=0 // loop_pre_header
    _
  $region3: #{combine_layers_forward.2} parent=0 // loop_header
    %s9 = sphi 0, %s13
    %p10 = scmp.ge.s32.totalorder %s9, 4
    %s16 = sphi 0, %s28
    %s17 = sphi 0, %s24
    %s18 = sphi 0, %s16
    %s19 = sphi 0, %s17
    %s20 = sphi 0, %s18
    %s21 = sphi 0, %s19
    %s33 = sphi 0, %s35
    %s36 = sphi 0, %s33
    %s37 = sphi 0, %s36
    %s53 = sphi 0, %s37
    %s57 = sphi 0, %s57
    %s59 = sphi 0, %s57
    %s60 = sphi 0, %s59
    %s74 = sphi 0, %s60
    %s78 = sphi 0, %s78
    %s80 = sphi 0, %s78
    %s81 = sphi 0, %s80
    %s95 = sphi 0, %s81
    %s103 = sphi 0, %s105
    %s106 = sphi 0, %s103
    %s107 = sphi 0, %s106
    %s123 = sphi 0, %s107
  $region4: #{combine_layers_forward.2} parent=0 // loop_header_branch
    %12 = sbr.rel (%p10) target = $region8
  $region5: #{combine_layers_forward.2} parent=0 // loop_body
    %s14 = ssub.s32 %s9, 1
    %s15 = ssub.s32 %s9, 2
    %s22 = sadd.s32 1, %s17
    %p23 = scmp.ge.s32.totalorder %s22, 1
    %s24 = scalar_select %p23, 0, %s22
    %s25 = sadd.s32 1, %s16
    %s26 = scalar_select %p23, %s25, %s16
    %p27 = scmp.ge.s32.totalorder %s26, 2
    %s28 = scalar_select %p27, 0, %s26
    %s29 = ssub.s32 %s16, %s28
    %s30 = ssub.s32 %s17, %s24
    %s31 = sor.u32 %s29, %s30
    %p32 = scmp.eq.s32.totalorder %s31, 0
    %s34 = sadd.s32 %s33, 1
    %s35 = scalar_select %p32, %s33, %s34
    %p38 = pneg %p32
    %p39 = scmp.eq.s32.totalorder %s9, 1
    %p40 = por %p38, %p39
    %p41 = scmp.ne.s32.totalorder %s33, %s36
    %p42 = scmp.eq.s32.totalorder %s9, 0
    %p43 = por %p41, %p42
    %p44 = scmp.ne.s32.totalorder %s33, %s36
    %p45 = scmp.eq.s32.totalorder %s14, 1
    %p46 = por %p44, %p45
    %p47 = scmp.ne.s32.totalorder %s36, %s37
    %p48 = scmp.eq.s32.totalorder %s14, 0
    %p49 = por %p47, %p48
    %p50 = scmp.ne.s32.totalorder %s36, %s37
    %p51 = scmp.eq.s32.totalorder %s15, 1
    %p52 = por %p50, %p51
    %p54 = scmp.ne.s32.totalorder %s37, %s53
    %p55 = scmp.eq.s32.totalorder %s15, 0
    %p56 = por %p54, %p55
    %s58 = sadd.s32 %s57, 1
    %p61 = scmp.eq.s32.totalorder %s9, 1
    %p62 = scmp.ne.s32.totalorder %s57, %s59
    %p63 = scmp.eq.s32.totalorder %s9, 0
    %p64 = por %p62, %p63
    %p65 = scmp.ne.s32.totalorder %s57, %s59
    %p66 = scmp.eq.s32.totalorder %s14, 1
    %p67 = por %p65, %p66
    %p68 = scmp.ne.s32.totalorder %s59, %s60
    %p69 = scmp.eq.s32.totalorder %s14, 0
    %p70 = por %p68, %p69
    %p71 = scmp.ne.s32.totalorder %s59, %s60
    %p72 = scmp.eq.s32.totalorder %s15, 1
    %p73 = por %p71, %p72
    %p75 = scmp.ne.s32.totalorder %s60, %s74
    %p76 = scmp.eq.s32.totalorder %s15, 0
    %p77 = por %p75, %p76
    %s79 = sadd.s32 %s78, 1
    %p82 = scmp.eq.s32.totalorder %s9, 1
    %p83 = scmp.ne.s32.totalorder %s78, %s80
    %p84 = scmp.eq.s32.totalorder %s9, 0
    %p85 = por %p83, %p84
    %p86 = scmp.ne.s32.totalorder %s78, %s80
    %p87 = scmp.eq.s32.totalorder %s14, 1
    %p88 = por %p86, %p87
    %p89 = scmp.ne.s32.totalorder %s80, %s81
    %p90 = scmp.eq.s32.totalorder %s14, 0
    %p91 = por %p89, %p90
    %p92 = scmp.ne.s32.totalorder %s80, %s81
    %p93 = scmp.eq.s32.totalorder %s15, 1
    %p94 = por %p92, %p93
    %p96 = scmp.ne.s32.totalorder %s81, %s95
    %p97 = scmp.eq.s32.totalorder %s15, 0
    %p98 = por %p96, %p97
    %s99 = ssub.s32 %s16, %s28
    %s100 = ssub.s32 %s17, %s24
    %s101 = sor.u32 %s99, %s100
    %p102 = scmp.eq.s32.totalorder %s101, 0
    %s104 = sadd.s32 %s103, 1
    %s105 = scalar_select %p102, %s103, %s104
    %p108 = pneg %p102
    %p109 = scmp.eq.s32.totalorder %s9, 1
    %p110 = por %p108, %p109
    %p111 = scmp.ne.s32.totalorder %s103, %s106
    %p112 = scmp.eq.s32.totalorder %s9, 0
    %p113 = por %p111, %p112
    %p114 = scmp.ne.s32.totalorder %s103, %s106
    %p115 = scmp.eq.s32.totalorder %s14, 1
    %p116 = por %p114, %p115
    %p117 = scmp.ne.s32.totalorder %s106, %s107
    %p118 = scmp.eq.s32.totalorder %s14, 0
    %p119 = por %p117, %p118
    %p120 = scmp.ne.s32.totalorder %s106, %s107
    %p121 = scmp.eq.s32.totalorder %s15, 1
    %p122 = por %p120, %p121
    %p124 = scmp.ne.s32.totalorder %s107, %s123
    %p125 = scmp.eq.s32.totalorder %s15, 0
    %p126 = por %p124, %p125
    %p127 = scmp.le.s32.totalorder 1, %s9
    %p128 = scmp.lt.s32.totalorder %s9, 3
    %p129 = pnand %p127, %p128
    %p130 = pneg %p129
    // Predicated region
    $region9: #{combine_layers_forward.2} parent=5 // pred_check
      _
    $region10: #{combine_layers_forward.2} parent=5 // pred_check_branch
      %132 = sbr.rel (%p129) target = $region12
    $region11: #{combine_layers_forward.2} parent=5 // pred_region
      %s133 = ssub.s32 %s9, 1
      // Predicated region
      $region13: #{combine_layers_forward.2} parent=11 // pred_check
        %p134 = pneg %p70
      $region14: #{combine_layers_forward.2} parent=11 // pred_check_branch
        %136 = sbr.rel (%p134) target = $region16
      $region15: #{combine_layers_forward.2} parent=11 // pred_region
        _
      $region16: #{combine_layers_forward.2} parent=11 // pred_fallthru
        _
      // Predicated region
      $region17: #{combine_layers_forward.2} parent=11 // pred_check
        %p137 = pneg %p91
      $region18: #{combine_layers_forward.2} parent=11 // pred_check_branch
        %139 = sbr.rel (%p137) target = $region20
      $region19: #{combine_layers_forward.2} parent=11 // pred_region
        _
      $region20: #{combine_layers_forward.2} parent=11 // pred_fallthru
        _
    $region12: #{combine_layers_forward.2} parent=5 // pred_fallthru
      _
    %p140 = scmp.lt.s32.totalorder %s9, 2
    // Predicated region
    $region21: #{combine_layers_forward.2} parent=5 // pred_check
      %p141 = pneg %p140
    $region22: #{combine_layers_forward.2} parent=5 // pred_check_branch
      %143 = sbr.rel (%p141) target = $region24
    $region23: #{combine_layers_forward.2} parent=5 // pred_region
      // Predicated region
      $region25: #{combine_layers_forward.2} parent=23 // pred_check
        %p144 = pneg %p43
      $region26: #{combine_layers_forward.2} parent=23 // pred_check_branch
        %146 = sbr.rel (%p144) target = $region28
      $region27: #{combine_layers_forward.2} parent=23 // pred_region
        %p147 = scmp.lt.s32.totalorder %s16, 1
        %s148 = scalar_select %p147, %s16, 1
        %p149 = scmp.lt.s32.totalorder %s17, 0
        %s150 = scalar_select %p149, %s17, 0
        %s151 = smul.addr %s148, 4
        %s152 = sadd.s32 %s150, %s151
        %s153 = smul.addr %s152, 8
        %s154 = scalar_lea.vmem %s0, %s153
      $region28: #{combine_layers_forward.2} parent=23 // pred_fallthru
        _
    $region24: #{combine_layers_forward.2} parent=5 // pred_fallthru
      _
    %p155 = scmp.le.s32.totalorder 1, %s9
    %p156 = scmp.lt.s32.totalorder %s9, 3
    %p157 = pnand %p155, %p156
    %p158 = pneg %p157
    // Predicated region
    $region29: #{combine_layers_forward.2} parent=5 // pred_check
      _
    $region30: #{combine_layers_forward.2} parent=5 // pred_check_branch
      %160 = sbr.rel (%p157) target = $region32
    $region31: #{combine_layers_forward.2} parent=5 // pred_region
      %s161 = ssub.s32 %s9, 1
      %p162 = scmp.lt.s32.totalorder %s18, 1
      %s163 = scalar_select %p162, %s18, 1
      %p164 = scmp.lt.s32.totalorder %s19, 0
      %s165 = scalar_select %p164, %s19, 0
      %s166 = smul.addr %s163, 4
      %s167 = sadd.s32 %s165, %s166
      %s168 = smul.addr %s167, 8
      %s169 = scalar_lea.vmem %s0, %s168
      %p170 = pneg %p49
      %p171 = pneg %p46
      %p172 = pneg %p70
      %p173 = pneg %p67
      %p174 = pneg %p91
      %p175 = pneg %p88
      %p176 = pneg %p119
      %p177 = pneg %p116
      %p178 = scmp.lt.s32.totalorder %s18, 1
      %s179 = scalar_select %p178, %s18, 1
      %p180 = scmp.lt.s32.totalorder %s19, 0
      %s181 = scalar_select %p180, %s19, 0
      %s182 = smul.addr %s179, 2
      %s183 = sadd.s32 %s181, %s182
      %s184 = smul.addr %s183, 8
      %s185 = scalar_lea.vmem %s3, %s184
      %p186 = scmp.lt.s32.totalorder %s18, 1
      %s187 = scalar_select %p186, %s18, 1
      %p188 = scmp.lt.s32.totalorder %s19, 0
      %s189 = scalar_select %p188, %s19, 0
      %s190 = smul.addr %s187, 4
      %s191 = sadd.s32 %s189, %s190
      %s192 = smul.addr %s191, 8
      %s193 = scalar_lea.vmem %s0, %s192
      %p194 = scmp.lt.s32.totalorder %s18, 1
      %s195 = scalar_select %p194, %s18, 1
      %p196 = scmp.lt.s32.totalorder %s19, 0
      %s197 = scalar_select %p196, %s19, 0
      %s198 = smul.addr %s195, 2
      %s199 = sadd.s32 %s197, %s198
      %s200 = smul.addr %s199, 8
      %s201 = scalar_lea.vmem %s3, %s200
      %v202 = vld [vmem:[%s1] sm:$0xff]
      %v203 = vld [vmem:[%s1 + $0x8] sm:$0xff]
      %v204 = vld [vmem:[%s193] sm:$0xff]
      %v205 = vld [vmem:[%s193 + $0x8] sm:$0xff]
      %v206 = vld [vmem:[%s193 + $0x10] sm:$0xff]
      %v207 = vld [vmem:[%s193 + $0x18] sm:$0xff]
      %v208 = vld [vmem:[%s2] sm:$0xff]
      %v209 = vld [vmem:[%s2 + $0x8] sm:$0xff]
      %211 = vset.pattern.permute.xlu0 0
      %212 = vperm.xlu0 %211, %v208
      %v213 = vpop.permute.xlu0 %212
      %216 = vset.pattern.permute.xlu0 0
      %217 = vperm.xlu0 %216, %v209
      %v218 = vpop.permute.xlu0 %217
      %vm220 = vcmask 261120
      %v222 = vsel %vm220, %v202, 0
      %v225 = vsel %vm220, %v203, 0
      %227 = vmatprep.subr.mxu0 0.0
      %228 = vmatpush1.msra.mxu0 0.0
      %229 = vmatprep.subr.mxu0 0.0
      %230 = vmatpush1.msra.mxu0 0.0
      %231 = vmatprep.subr.mxu0 0.0
      %232 = vmatpush1.msra.mxu0 0.0
      %233 = vmatprep.subr.mxu0 0.0
      %234 = vmatpush1.msra.mxu0 0.0
      %235 = vmatprep.subr.mxu0 0.0
      %236 = vmatpush1.msra.mxu0 0.0
      %237 = vmatprep.subr.mxu0 0.0
      %238 = vmatpush1.msra.mxu0 0.0
      %239 = vmatprep.subr.mxu0 0.0
      %240 = vmatpush1.msra.mxu0 0.0
      %241 = vmatprep.subr.mxu0 0.0
      %242 = vmatpush1.msra.mxu0 0.0
      %243 = vmatprep.subr.mxu0 0.0
      %244 = vmatpush1.msra.mxu0 0.0
      %245 = vmatprep.subr.mxu0 0.0
      %246 = vmatpush1.msra.mxu0 0.0
      %247 = vmatprep.subr.mxu0 0.0
      %248 = vmatpush1.msra.mxu0 0.0
      %249 = vmatprep.subr.mxu0 0.0
      %250 = vmatpush1.msra.mxu0 0.0
      %251 = vmatprep.subr.mxu0 0.0
      %252 = vmatpush1.msra.mxu0 %v207
      %253 = vmatprep.subr.mxu0 0.0
      %254 = vmatpush1.msra.mxu0 %v206
      %255 = vmatprep.subr.mxu0 0.0
      %256 = vmatpush1.msra.mxu0 %v205
      %257 = vmatprep.subr.mxu0 0.0
      %258 = vmatpush1.msra.mxu0 %v204
      %259 = vmatprep.subr.mxu0 0.0
      %260 = vmatpush2.msra.mxu0 0.0
      %261 = vmatprep.subr.mxu0 0.0
      %262 = vmatpush2.msra.mxu0 0.0
      %263 = vmatprep.subr.mxu0 0.0
      %264 = vmatpush2.msra.mxu0 0.0
      %265 = vmatprep.subr.mxu0 0.0
      %266 = vmatpush2.msra.mxu0 0.0
      %267 = vmatprep.subr.mxu0 0.0
      %268 = vmatpush2.msra.mxu0 0.0
      %269 = vmatprep.subr.mxu0 0.0
      %270 = vmatpush2.msra.mxu0 0.0
      %271 = vmatprep.subr.mxu0 0.0
      %272 = vmatpush2.msra.mxu0 0.0
      %273 = vmatprep.subr.mxu0 0.0
      %274 = vmatpush2.msra.mxu0 0.0
      %275 = vmatprep.subr.mxu0 0.0
      %276 = vmatpush2.msra.mxu0 0.0
      %277 = vmatprep.subr.mxu0 0.0
      %278 = vmatpush2.msra.mxu0 0.0
      %279 = vmatprep.subr.mxu0 0.0
      %280 = vmatpush2.msra.mxu0 0.0
      %281 = vmatprep.subr.mxu0 0.0
      %282 = vmatpush2.msra.mxu0 0.0
      %283 = vmatprep.subr.mxu0 0.0
      %284 = vmatpush2.msra.mxu0 0.0
      %285 = vmatprep.subr.mxu0 0.0
      %286 = vmatpush2.msra.mxu0 0.0
      %287 = vmatprep.subr.mxu0 0.0
      %288 = vmatpush2.msra.mxu0 0.0
      %289 = vmatprep.subr.mxu0 0.0
      %290 = vmatpush2.msra.mxu0 0.0
      %291 = vmatprep.mubr.f32.mxu0 0.0
      %292 = vmatmul.mubr.f32.gmra.mxu0 %v222
      %v293 = vpop.f32.mrf.mxu0
      %v294 = vadd.f32 %v213, %v293
      %v295 = vpop.f32.mrf.mxu0
      %296 = vmatprep.mubr.f32.mxu0 0.0
      %297 = vmatmul.mubr.f32.gmra.mxu0 %v225
      %v298 = vpop.f32.mrf.mxu0
      %v299 = vadd.f32 %v218, %v298
      %v300 = vpop.f32.mrf.mxu0
      %301 = vdwg.mxu0
      %v302 = vmax.f32 %v294, 0.0
      %v303 = vmax.f32 %v299, 0.0
      %vm304 = vcmask 523264
      %305 = vst.msk [vmem:[%s201] sm:$0xff] %vm304, %v302
      %306 = vst.msk [vmem:[%s201 + $0x8] sm:$0xff] %vm304, %v303
      %p307 = scmp.lt.s32.totalorder %s18, 1
      %s308 = scalar_select %p307, %s18, 1
      %p309 = scmp.lt.s32.totalorder %s19, 0
      %s310 = scalar_select %p309, %s19, 0
      %s311 = smul.addr %s308, 2
      %s312 = sadd.s32 %s310, %s311
      %s313 = smul.addr %s312, 8
      %s314 = scalar_lea.vmem %s3, %s313
      // Predicated region
      $region33: #{combine_layers_forward.2} parent=31 // pred_check
        %p315 = pneg %p116
      $region34: #{combine_layers_forward.2} parent=31 // pred_check_branch
        %317 = sbr.rel (%p315) target = $region36
      $region35: #{combine_layers_forward.2} parent=31 // pred_region
        _
      $region36: #{combine_layers_forward.2} parent=31 // pred_fallthru
        _
    $region32: #{combine_layers_forward.2} parent=5 // pred_fallthru
      _
    %p318 = scmp.le.s32.totalorder 2, %s9
    // Predicated region
    $region37: #{combine_layers_forward.2} parent=5 // pred_check
      %p319 = pneg %p318
    $region38: #{combine_layers_forward.2} parent=5 // pred_check_branch
      %321 = sbr.rel (%p319) target = $region40
    $region39: #{combine_layers_forward.2} parent=5 // pred_region
      %s322 = ssub.s32 %s9, 2
      // Predicated region
      $region41: #{combine_layers_forward.2} parent=39 // pred_check
        %p323 = pneg %p122
      $region42: #{combine_layers_forward.2} parent=39 // pred_check_branch
        %325 = sbr.rel (%p323) target = $region44
      $region43: #{combine_layers_forward.2} parent=39 // pred_region
        %p326 = scmp.lt.s32.totalorder %s20, 1
        %s327 = scalar_select %p326, %s20, 1
        %p328 = scmp.lt.s32.totalorder %s21, 0
        %s329 = scalar_select %p328, %s21, 0
        %s330 = smul.addr %s327, 2
        %s331 = sadd.s32 %s329, %s330
        %s332 = smul.addr %s331, 8
        %s333 = scalar_lea.vmem %s3, %s332
      $region44: #{combine_layers_forward.2} parent=39 // pred_fallthru
        _
    $region40: #{combine_layers_forward.2} parent=5 // pred_fallthru
      _
  $region6: #{combine_layers_forward.2} parent=0 // loop_footer
    %s13 = sadd.s32 1, %s9
  $region7: #{combine_layers_forward.2} parent=0 // loop_footer_branch
    %8 = sbr.rel target = $region3
  $region8: #{combine_layers_forward.2} parent=0 // loop_exit
    _

// kernel: combine_layers_forward.3
$region0: #{combine_layers_forward.3}
  #allocation0 [shape = 'u32[]', space=smem, size = 0x4, offset = 0x4, fixed_abs, tag = 'smem constant byte address 0x4 - core index']
  #allocation1 [shape = 'u32[144,128]{1,0:T(1,128)}', space=vmem, size = 0x12000, scoped, tag = 'internal scratch']
  %s0 = inlined_call_operand.vmem [shape: f32[2,16,256], index: 0, kind: input, shape index: {}]
  %s1 = inlined_call_operand.vmem [shape: f32[2,16,256], index: 1, kind: input, shape index: {}]
  %s2 = inlined_call_operand.vmem [shape: f32[32,16], index: 2, kind: input, shape index: {}]
  %s3 = inlined_call_operand.vmem [shape: f32[32,16], index: 3, kind: input, shape index: {}]
  %s4 = inlined_call_operand.vmem [shape: f32[32,1], index: 4, kind: input, shape index: {}]
  %s5 = inlined_call_operand.vmem [shape: f32[2,32,256], index: 5, kind: output, shape index: {}]
  %s6 = sld [smem:[#allocation0]]
  $region53: #{combine_layers_forward.3} parent=0
    _
  %s8 = ssub.s32 1, %s6
  %s9 = scalar_select 0, %s8, %s6
  loop: start=0, step=1, limit=4
  $region2: #{combine_layers_forward.3} parent=0 // loop_pre_header
    _
  $region3: #{combine_layers_forward.3} parent=0 // loop_header
    %s11 = sphi 0, %s15
    %p12 = scmp.ge.s32.totalorder %s11, 4
    %s18 = sphi 0, %s30
    %s19 = sphi 0, %s26
    %s20 = sphi 0, %s18
    %s21 = sphi 0, %s19
    %s22 = sphi 0, %s20
    %s23 = sphi 0, %s21
    %s35 = sphi 0, %s37
    %s38 = sphi 0, %s35
    %s39 = sphi 0, %s38
    %s55 = sphi 0, %s39
    %s63 = sphi 0, %s65
    %s66 = sphi 0, %s63
    %s67 = sphi 0, %s66
    %s83 = sphi 0, %s67
    %s87 = sphi 0, %s87
    %s89 = sphi 0, %s87
    %s90 = sphi 0, %s89
    %s104 = sphi 0, %s90
    %s108 = sphi 0, %s108
    %s110 = sphi 0, %s108
    %s111 = sphi 0, %s110
    %s125 = sphi 0, %s111
    %s129 = sphi 0, %s129
    %s131 = sphi 0, %s129
    %s132 = sphi 0, %s131
    %s146 = sphi 0, %s132
    %s154 = sphi 0, %s156
    %s157 = sphi 0, %s154
    %s158 = sphi 0, %s157
    %s174 = sphi 0, %s158
  $region4: #{combine_layers_forward.3} parent=0 // loop_header_branch
    %14 = sbr.rel (%p12) target = $region8
  $region5: #{combine_layers_forward.3} parent=0 // loop_body
    %s16 = ssub.s32 %s11, 1
    %s17 = ssub.s32 %s11, 2
    %s24 = sadd.s32 1, %s19
    %p25 = scmp.ge.s32.totalorder %s24, 1
    %s26 = scalar_select %p25, 0, %s24
    %s27 = sadd.s32 1, %s18
    %s28 = scalar_select %p25, %s27, %s18
    %p29 = scmp.ge.s32.totalorder %s28, 2
    %s30 = scalar_select %p29, 0, %s28
    %s31 = ssub.s32 %s18, %s30
    %s32 = ssub.s32 %s19, %s26
    %s33 = sor.u32 %s31, %s32
    %p34 = scmp.eq.s32.totalorder %s33, 0
    %s36 = sadd.s32 %s35, 1
    %s37 = scalar_select %p34, %s35, %s36
    %p40 = pneg %p34
    %p41 = scmp.eq.s32.totalorder %s11, 1
    %p42 = por %p40, %p41
    %p43 = scmp.ne.s32.totalorder %s35, %s38
    %p44 = scmp.eq.s32.totalorder %s11, 0
    %p45 = por %p43, %p44
    %p46 = scmp.ne.s32.totalorder %s35, %s38
    %p47 = scmp.eq.s32.totalorder %s16, 1
    %p48 = por %p46, %p47
    %p49 = scmp.ne.s32.totalorder %s38, %s39
    %p50 = scmp.eq.s32.totalorder %s16, 0
    %p51 = por %p49, %p50
    %p52 = scmp.ne.s32.totalorder %s38, %s39
    %p53 = scmp.eq.s32.totalorder %s17, 1
    %p54 = por %p52, %p53
    %p56 = scmp.ne.s32.totalorder %s39, %s55
    %p57 = scmp.eq.s32.totalorder %s17, 0
    %p58 = por %p56, %p57
    %s59 = ssub.s32 %s18, %s30
    %s60 = ssub.s32 %s19, %s26
    %s61 = sor.u32 %s59, %s60
    %p62 = scmp.eq.s32.totalorder %s61, 0
    %s64 = sadd.s32 %s63, 1
    %s65 = scalar_select %p62, %s63, %s64
    %p68 = pneg %p62
    %p69 = scmp.eq.s32.totalorder %s11, 1
    %p70 = por %p68, %p69
    %p71 = scmp.ne.s32.totalorder %s63, %s66
    %p72 = scmp.eq.s32.totalorder %s11, 0
    %p73 = por %p71, %p72
    %p74 = scmp.ne.s32.totalorder %s63, %s66
    %p75 = scmp.eq.s32.totalorder %s16, 1
    %p76 = por %p74, %p75
    %p77 = scmp.ne.s32.totalorder %s66, %s67
    %p78 = scmp.eq.s32.totalorder %s16, 0
    %p79 = por %p77, %p78
    %p80 = scmp.ne.s32.totalorder %s66, %s67
    %p81 = scmp.eq.s32.totalorder %s17, 1
    %p82 = por %p80, %p81
    %p84 = scmp.ne.s32.totalorder %s67, %s83
    %p85 = scmp.eq.s32.totalorder %s17, 0
    %p86 = por %p84, %p85
    %s88 = sadd.s32 %s87, 1
    %p91 = scmp.eq.s32.totalorder %s11, 1
    %p92 = scmp.ne.s32.totalorder %s87, %s89
    %p93 = scmp.eq.s32.totalorder %s11, 0
    %p94 = por %p92, %p93
    %p95 = scmp.ne.s32.totalorder %s87, %s89
    %p96 = scmp.eq.s32.totalorder %s16, 1
    %p97 = por %p95, %p96
    %p98 = scmp.ne.s32.totalorder %s89, %s90
    %p99 = scmp.eq.s32.totalorder %s16, 0
    %p100 = por %p98, %p99
    %p101 = scmp.ne.s32.totalorder %s89, %s90
    %p102 = scmp.eq.s32.totalorder %s17, 1
    %p103 = por %p101, %p102
    %p105 = scmp.ne.s32.totalorder %s90, %s104
    %p106 = scmp.eq.s32.totalorder %s17, 0
    %p107 = por %p105, %p106
    %s109 = sadd.s32 %s108, 1
    %p112 = scmp.eq.s32.totalorder %s11, 1
    %p113 = scmp.ne.s32.totalorder %s108, %s110
    %p114 = scmp.eq.s32.totalorder %s11, 0
    %p115 = por %p113, %p114
    %p116 = scmp.ne.s32.totalorder %s108, %s110
    %p117 = scmp.eq.s32.totalorder %s16, 1
    %p118 = por %p116, %p117
    %p119 = scmp.ne.s32.totalorder %s110, %s111
    %p120 = scmp.eq.s32.totalorder %s16, 0
    %p121 = por %p119, %p120
    %p122 = scmp.ne.s32.totalorder %s110, %s111
    %p123 = scmp.eq.s32.totalorder %s17, 1
    %p124 = por %p122, %p123
    %p126 = scmp.ne.s32.totalorder %s111, %s125
    %p127 = scmp.eq.s32.totalorder %s17, 0
    %p128 = por %p126, %p127
    %s130 = sadd.s32 %s129, 1
    %p133 = scmp.eq.s32.totalorder %s11, 1
    %p134 = scmp.ne.s32.totalorder %s129, %s131
    %p135 = scmp.eq.s32.totalorder %s11, 0
    %p136 = por %p134, %p135
    %p137 = scmp.ne.s32.totalorder %s129, %s131
    %p138 = scmp.eq.s32.totalorder %s16, 1
    %p139 = por %p137, %p138
    %p140 = scmp.ne.s32.totalorder %s131, %s132
    %p141 = scmp.eq.s32.totalorder %s16, 0
    %p142 = por %p140, %p141
    %p143 = scmp.ne.s32.totalorder %s131, %s132
    %p144 = scmp.eq.s32.totalorder %s17, 1
    %p145 = por %p143, %p144
    %p147 = scmp.ne.s32.totalorder %s132, %s146
    %p148 = scmp.eq.s32.totalorder %s17, 0
    %p149 = por %p147, %p148
    %s150 = ssub.s32 %s18, %s30
    %s151 = ssub.s32 %s19, %s26
    %s152 = sor.u32 %s150, %s151
    %p153 = scmp.eq.s32.totalorder %s152, 0
    %s155 = sadd.s32 %s154, 1
    %s156 = scalar_select %p153, %s154, %s155
    %p159 = pneg %p153
    %p160 = scmp.eq.s32.totalorder %s11, 1
    %p161 = por %p159, %p160
    %p162 = scmp.ne.s32.totalorder %s154, %s157
    %p163 = scmp.eq.s32.totalorder %s11, 0
    %p164 = por %p162, %p163
    %p165 = scmp.ne.s32.totalorder %s154, %s157
    %p166 = scmp.eq.s32.totalorder %s16, 1
    %p167 = por %p165, %p166
    %p168 = scmp.ne.s32.totalorder %s157, %s158
    %p169 = scmp.eq.s32.totalorder %s16, 0
    %p170 = por %p168, %p169
    %p171 = scmp.ne.s32.totalorder %s157, %s158
    %p172 = scmp.eq.s32.totalorder %s17, 1
    %p173 = por %p171, %p172
    %p175 = scmp.ne.s32.totalorder %s158, %s174
    %p176 = scmp.eq.s32.totalorder %s17, 0
    %p177 = por %p175, %p176
    %p178 = scmp.le.s32.totalorder 1, %s11
    %p179 = scmp.lt.s32.totalorder %s11, 3
    %p180 = pnand %p178, %p179
    %p181 = pneg %p180
    // Predicated region
    $region9: #{combine_layers_forward.3} parent=5 // pred_check
      _
    $region10: #{combine_layers_forward.3} parent=5 // pred_check_branch
      %183 = sbr.rel (%p180) target = $region12
    $region11: #{combine_layers_forward.3} parent=5 // pred_region
      %s184 = ssub.s32 %s11, 1
      // Predicated region
      $region13: #{combine_layers_forward.3} parent=11 // pred_check
        %p185 = pneg %p100
      $region14: #{combine_layers_forward.3} parent=11 // pred_check_branch
        %187 = sbr.rel (%p185) target = $region16
      $region15: #{combine_layers_forward.3} parent=11 // pred_region
        _
      $region16: #{combine_layers_forward.3} parent=11 // pred_fallthru
        _
      // Predicated region
      $region17: #{combine_layers_forward.3} parent=11 // pred_check
        %p188 = pneg %p121
      $region18: #{combine_layers_forward.3} parent=11 // pred_check_branch
        %190 = sbr.rel (%p188) target = $region20
      $region19: #{combine_layers_forward.3} parent=11 // pred_region
        _
      $region20: #{combine_layers_forward.3} parent=11 // pred_fallthru
        _
      // Predicated region
      $region21: #{combine_layers_forward.3} parent=11 // pred_check
        %p191 = pneg %p142
      $region22: #{combine_layers_forward.3} parent=11 // pred_check_branch
        %193 = sbr.rel (%p191) target = $region24
      $region23: #{combine_layers_forward.3} parent=11 // pred_region
        _
      $region24: #{combine_layers_forward.3} parent=11 // pred_fallthru
        _
    $region12: #{combine_layers_forward.3} parent=5 // pred_fallthru
      _
    %p194 = scmp.lt.s32.totalorder %s11, 2
    // Predicated region
    $region25: #{combine_layers_forward.3} parent=5 // pred_check
      %p195 = pneg %p194
    $region26: #{combine_layers_forward.3} parent=5 // pred_check_branch
      %197 = sbr.rel (%p195) target = $region28
    $region27: #{combine_layers_forward.3} parent=5 // pred_region
      // Predicated region
      $region29: #{combine_layers_forward.3} parent=27 // pred_check
        %p198 = pneg %p45
      $region30: #{combine_layers_forward.3} parent=27 // pred_check_branch
        %200 = sbr.rel (%p198) target = $region32
      $region31: #{combine_layers_forward.3} parent=27 // pred_region
        %s201 = smul.u32 2, %s19
        %p202 = scmp.lt.s32.totalorder %s18, 1
        %s203 = scalar_select %p202, %s18, 1
        %p204 = scmp.lt.s32.totalorder %s201, 1
        %s205 = scalar_select %p204, %s201, 1
        %s206 = smul.addr %s203, 4
        %s207 = sadd.s32 %s205, %s206
        %s208 = smul.addr %s207, 8
        %s209 = scalar_lea.vmem %s0, %s208
        %s210 = smul.u32 2, %s19
      $region32: #{combine_layers_forward.3} parent=27 // pred_fallthru
        _
      // Predicated region
      $region33: #{combine_layers_forward.3} parent=27 // pred_check
        %p211 = pneg %p73
      $region34: #{combine_layers_forward.3} parent=27 // pred_check_branch
        %213 = sbr.rel (%p211) target = $region36
      $region35: #{combine_layers_forward.3} parent=27 // pred_region
        %s214 = smul.u32 2, %s19
        %p215 = scmp.lt.s32.totalorder %s18, 1
        %s216 = scalar_select %p215, %s18, 1
        %p217 = scmp.lt.s32.totalorder %s214, 1
        %s218 = scalar_select %p217, %s214, 1
        %s219 = smul.addr %s216, 4
        %s220 = sadd.s32 %s218, %s219
        %s221 = smul.addr %s220, 8
        %s222 = scalar_lea.vmem %s1, %s221
        %s223 = smul.u32 2, %s19
      $region36: #{combine_layers_forward.3} parent=27 // pred_fallthru
        _
    $region28: #{combine_layers_forward.3} parent=5 // pred_fallthru
      _
    %p224 = scmp.le.s32.totalorder 1, %s11
    %p225 = scmp.lt.s32.totalorder %s11, 3
    %p226 = pnand %p224, %p225
    %p227 = pneg %p226
    // Predicated region
    $region37: #{combine_layers_forward.3} parent=5 // pred_check
      _
    $region38: #{combine_layers_forward.3} parent=5 // pred_check_branch
      %229 = sbr.rel (%p226) target = $region40
    $region39: #{combine_layers_forward.3} parent=5 // pred_region
      %s230 = ssub.s32 %s11, 1
      %s231 = smul.u32 2, %s21
      %p232 = scmp.lt.s32.totalorder %s20, 1
      %s233 = scalar_select %p232, %s20, 1
      %p234 = scmp.lt.s32.totalorder %s231, 1
      %s235 = scalar_select %p234, %s231, 1
      %s236 = smul.addr %s233, 4
      %s237 = sadd.s32 %s235, %s236
      %s238 = smul.addr %s237, 8
      %s239 = scalar_lea.vmem %s0, %s238
      %p240 = pneg %p51
      %p241 = pneg %p48
      %s242 = smul.u32 2, %s21
      %p243 = scmp.lt.s32.totalorder %s20, 1
      %s244 = scalar_select %p243, %s20, 1
      %p245 = scmp.lt.s32.totalorder %s242, 1
      %s246 = scalar_select %p245, %s242, 1
      %s247 = smul.addr %s244, 4
      %s248 = sadd.s32 %s246, %s247
      %s249 = smul.addr %s248, 8
      %s250 = scalar_lea.vmem %s1, %s249
      %p251 = pneg %p79
      %p252 = pneg %p76
      %p253 = pneg %p100
      %p254 = pneg %p97
      %p255 = pneg %p121
      %p256 = pneg %p118
      %p257 = pneg %p142
      %p258 = pneg %p139
      %p259 = pneg %p170
      %p260 = pneg %p167
      %s261 = smul.u32 2, %s21
      %p262 = scmp.lt.s32.totalorder %s20, 1
      %s263 = scalar_select %p262, %s20, 1
      %p264 = scmp.lt.s32.totalorder %s261, 1
      %s265 = scalar_select %p264, %s261, 1
      %s266 = smul.addr %s263, 8
      %s267 = sadd.s32 %s265, %s266
      %s268 = smul.addr %s267, 8
      %s269 = scalar_lea.vmem %s5, %s268
      %s270 = smul.u32 2, %s21
      %p271 = scmp.lt.s32.totalorder %s20, 1
      %s272 = scalar_select %p271, %s20, 1
      %p273 = scmp.lt.s32.totalorder %s270, 1
      %s274 = scalar_select %p273, %s270, 1
      %s275 = smul.addr %s272, 4
      %s276 = sadd.s32 %s274, %s275
      %s277 = smul.addr %s276, 8
      %s278 = scalar_lea.vmem %s0, %s277
      %s279 = smul.u32 2, %s21
      %s280 = smul.u32 2, %s21
      %p281 = scmp.lt.s32.totalorder %s20, 1
      %s282 = scalar_select %p281, %s20, 1
      %p283 = scmp.lt.s32.totalorder %s280, 1
      %s284 = scalar_select %p283, %s280, 1
      %s285 = smul.addr %s282, 4
      %s286 = sadd.s32 %s284, %s285
      %s287 = smul.addr %s286, 8
      %s288 = scalar_lea.vmem %s1, %s287
      %s289 = smul.u32 2, %s21
      %s290 = smul.u32 2, %s21
      %p291 = scmp.lt.s32.totalorder %s20, 1
      %s292 = scalar_select %p291, %s20, 1
      %p293 = scmp.lt.s32.totalorder %s290, 1
      %s294 = scalar_select %p293, %s290, 1
      %s295 = smul.addr %s292, 8
      %s296 = sadd.s32 %s294, %s295
      %s297 = smul.addr %s296, 8
      %s298 = scalar_lea.vmem %s5, %s297
      %s299 = smul.u32 2, %s21
      %v300 = vld [vmem:[%s2] sm:$0xff]
      %v301 = vld [vmem:[%s2 + $0x8] sm:$0xff]
      %v302 = vld [vmem:[%s2 + $0x10] sm:$0xff]
      %v303 = vld [vmem:[%s2 + $0x18] sm:$0xff]
      %v304 = vld [vmem:[%s278] sm:$0xff]
      %v305 = vld [vmem:[%s278 + $0x8] sm:$0xff]
      %v306 = vld [vmem:[%s278 + $0x10] sm:$0xff]
      %v307 = vld [vmem:[%s278 + $0x18] sm:$0xff]
      %v308 = vld [vmem:[%s3] sm:$0xff]
      %v309 = vld [vmem:[%s3 + $0x8] sm:$0xff]
      %v310 = vld [vmem:[%s3 + $0x10] sm:$0xff]
      %v311 = vld [vmem:[%s3 + $0x18] sm:$0xff]
      %v312 = vld [vmem:[%s288] sm:$0xff]
      %v313 = vld [vmem:[%s288 + $0x8] sm:$0xff]
      %v314 = vld [vmem:[%s288 + $0x10] sm:$0xff]
      %v315 = vld [vmem:[%s288 + $0x18] sm:$0xff]
      %vm316 = vcmask 130048
      %v318 = vsel %vm316, %v308, 0
      %v321 = vsel %vm316, %v309, 0
      %v324 = vsel %vm316, %v310, 0
      %v327 = vsel %vm316, %v311, 0
      %329 = vmatprep.subr.mxu0 0.0
      %330 = vmatpush1.msra.mxu0 0.0
      %331 = vmatprep.subr.mxu0 0.0
      %332 = vmatpush1.msra.mxu0 0.0
      %333 = vmatprep.subr.mxu0 0.0
      %334 = vmatpush1.msra.mxu0 0.0
      %335 = vmatprep.subr.mxu0 0.0
      %336 = vmatpush1.msra.mxu0 0.0
      %337 = vmatprep.subr.mxu0 0.0
      %338 = vmatpush1.msra.mxu0 0.0
      %339 = vmatprep.subr.mxu0 0.0
      %340 = vmatpush1.msra.mxu0 0.0
      %341 = vmatprep.subr.mxu0 0.0
      %342 = vmatpush1.msra.mxu0 0.0
      %343 = vmatprep.subr.mxu0 0.0
      %344 = vmatpush1.msra.mxu0 0.0
      %345 = vmatprep.subr.mxu0 0.0
      %346 = vmatpush1.msra.mxu0 0.0
      %347 = vmatprep.subr.mxu0 0.0
      %348 = vmatpush1.msra.mxu0 0.0
      %349 = vmatprep.subr.mxu0 0.0
      %350 = vmatpush1.msra.mxu0 0.0
      %351 = vmatprep.subr.mxu0 0.0
      %352 = vmatpush1.msra.mxu0 0.0
      %353 = vmatprep.subr.mxu0 0.0
      %354 = vmatpush1.msra.mxu0 0.0
      %355 = vmatprep.subr.mxu0 0.0
      %356 = vmatpush1.msra.mxu0 0.0
      %357 = vmatprep.subr.mxu0 %v315
      %358 = vmatpush1.msra.mxu0 %v314
      %359 = vmatprep.subr.mxu0 %v313
      %360 = vmatpush1.msra.mxu0 %v312
      %361 = vmatprep.subr.mxu0 0.0
      %362 = vmatpush2.msra.mxu0 0.0
      %363 = vmatprep.subr.mxu0 0.0
      %364 = vmatpush2.msra.mxu0 0.0
      %365 = vmatprep.subr.mxu0 0.0
      %366 = vmatpush2.msra.mxu0 0.0
      %367 = vmatprep.subr.mxu0 0.0
      %368 = vmatpush2.msra.mxu0 0.0
      %369 = vmatprep.subr.mxu0 0.0
      %370 = vmatpush2.msra.mxu0 0.0
      %371 = vmatprep.subr.mxu0 0.0
      %372 = vmatpush2.msra.mxu0 0.0
      %373 = vmatprep.subr.mxu0 0.0
      %374 = vmatpush2.msra.mxu0 0.0
      %375 = vmatprep.subr.mxu0 0.0
      %376 = vmatpush2.msra.mxu0 0.0
      %377 = vmatprep.subr.mxu0 0.0
      %378 = vmatpush2.msra.mxu0 0.0
      %379 = vmatprep.subr.mxu0 0.0
      %380 = vmatpush2.msra.mxu0 0.0
      %381 = vmatprep.subr.mxu0 0.0
      %382 = vmatpush2.msra.mxu0 0.0
      %383 = vmatprep.subr.mxu0 0.0
      %384 = vmatpush2.msra.mxu0 0.0
      %385 = vmatprep.subr.mxu0 0.0
      %386 = vmatpush2.msra.mxu0 0.0
      %387 = vmatprep.subr.mxu0 0.0
      %388 = vmatpush2.msra.mxu0 0.0
      %389 = vmatprep.subr.mxu0 0.0
      %390 = vmatpush2.msra.mxu0 0.0
      %391 = vmatprep.subr.mxu0 0.0
      %392 = vmatpush2.msra.mxu0 0.0
      %393 = vmatprep.mubr.f32.mxu0 0.0
      %394 = vmatmul.mubr.f32.gmra.mxu0 %v318
      %v395 = vpop.f32.mrf.mxu0
      %v396 = vadd.f32 0.0, %v395
      %v397 = vpop.f32.mrf.mxu0
      %v398 = vadd.f32 0.0, %v397
      %399 = vmatprep.mubr.f32.mxu0 0.0
      %400 = vmatmul.mubr.f32.gmra.mxu0 %v321
      %v401 = vpop.f32.mrf.mxu0
      %v402 = vadd.f32 0.0, %v401
      %v403 = vpop.f32.mrf.mxu0
      %v404 = vadd.f32 0.0, %v403
      %405 = vmatprep.mubr.f32.mxu0 0.0
      %406 = vmatmul.mubr.f32.gmra.mxu0 %v324
      %v407 = vpop.f32.mrf.mxu0
      %v408 = vadd.f32 0.0, %v407
      %v409 = vpop.f32.mrf.mxu0
      %v410 = vadd.f32 0.0, %v409
      %411 = vmatprep.mubr.f32.mxu0 0.0
      %412 = vmatmul.mubr.f32.gmra.mxu0 %v327
      %v413 = vpop.f32.mrf.mxu0
      %v414 = vadd.f32 0.0, %v413
      %v415 = vpop.f32.mrf.mxu0
      %v416 = vadd.f32 0.0, %v415
      %417 = vdwg.mxu0
      %v419 = vsel %vm316, %v300, 0
      %v422 = vsel %vm316, %v301, 0
      %v425 = vsel %vm316, %v302, 0
      %v428 = vsel %vm316, %v303, 0
      %430 = vmatprep.subr.mxu0 0.0
      %431 = vmatpush1.msra.mxu0 0.0
      %432 = vmatprep.subr.mxu0 0.0
      %433 = vmatpush1.msra.mxu0 0.0
      %434 = vmatprep.subr.mxu0 0.0
      %435 = vmatpush1.msra.mxu0 0.0
      %436 = vmatprep.subr.mxu0 0.0
      %437 = vmatpush1.msra.mxu0 0.0
      %438 = vmatprep.subr.mxu0 0.0
      %439 = vmatpush1.msra.mxu0 0.0
      %440 = vmatprep.subr.mxu0 0.0
      %441 = vmatpush1.msra.mxu0 0.0
      %442 = vmatprep.subr.mxu0 0.0
      %443 = vmatpush1.msra.mxu0 0.0
      %444 = vmatprep.subr.mxu0 0.0
      %445 = vmatpush1.msra.mxu0 0.0
      %446 = vmatprep.subr.mxu0 0.0
      %447 = vmatpush1.msra.mxu0 0.0
      %448 = vmatprep.subr.mxu0 0.0
      %449 = vmatpush1.msra.mxu0 0.0
      %450 = vmatprep.subr.mxu0 0.0
      %451 = vmatpush1.msra.mxu0 0.0
      %452 = vmatprep.subr.mxu0 0.0
      %453 = vmatpush1.msra.mxu0 0.0
      %454 = vmatprep.subr.mxu0 0.0
      %455 = vmatpush1.msra.mxu0 0.0
      %456 = vmatprep.subr.mxu0 0.0
      %457 = vmatpush1.msra.mxu0 0.0
      %458 = vmatprep.subr.mxu0 %v307
      %459 = vmatpush1.msra.mxu0 %v306
      %460 = vmatprep.subr.mxu0 %v305
      %461 = vmatpush1.msra.mxu0 %v304
      %462 = vmatprep.subr.mxu0 0.0
      %463 = vmatpush2.msra.mxu0 0.0
      %464 = vmatprep.subr.mxu0 0.0
      %465 = vmatpush2.msra.mxu0 0.0
      %466 = vmatprep.subr.mxu0 0.0
      %467 = vmatpush2.msra.mxu0 0.0
      %468 = vmatprep.subr.mxu0 0.0
      %469 = vmatpush2.msra.mxu0 0.0
      %470 = vmatprep.subr.mxu0 0.0
      %471 = vmatpush2.msra.mxu0 0.0
      %472 = vmatprep.subr.mxu0 0.0
      %473 = vmatpush2.msra.mxu0 0.0
      %474 = vmatprep.subr.mxu0 0.0
      %475 = vmatpush2.msra.mxu0 0.0
      %476 = vmatprep.subr.mxu0 0.0
      %477 = vmatpush2.msra.mxu0 0.0
      %478 = vmatprep.subr.mxu0 0.0
      %479 = vmatpush2.msra.mxu0 0.0
      %480 = vmatprep.subr.mxu0 0.0
      %481 = vmatpush2.msra.mxu0 0.0
      %482 = vmatprep.subr.mxu0 0.0
      %483 = vmatpush2.msra.mxu0 0.0
      %484 = vmatprep.subr.mxu0 0.0
      %485 = vmatpush2.msra.mxu0 0.0
      %486 = vmatprep.subr.mxu0 0.0
      %487 = vmatpush2.msra.mxu0 0.0
      %488 = vmatprep.subr.mxu0 0.0
      %489 = vmatpush2.msra.mxu0 0.0
      %490 = vmatprep.subr.mxu0 0.0
      %491 = vmatpush2.msra.mxu0 0.0
      %492 = vmatprep.subr.mxu0 0.0
      %493 = vmatpush2.msra.mxu0 0.0
      %494 = vmatprep.mubr.f32.mxu0 0.0
      %495 = vmatmul.mubr.f32.gmra.mxu0 %v419
      %v496 = vpop.f32.mrf.mxu0
      %v497 = vadd.f32 %v396, %v496
      %v498 = vpop.f32.mrf.mxu0
      %v499 = vadd.f32 %v398, %v498
      %500 = vmatprep.mubr.f32.mxu0 0.0
      %501 = vmatmul.mubr.f32.gmra.mxu0 %v422
      %v502 = vpop.f32.mrf.mxu0
      %v503 = vadd.f32 %v402, %v502
      %v504 = vpop.f32.mrf.mxu0
      %v505 = vadd.f32 %v404, %v504
      %506 = vmatprep.mubr.f32.mxu0 0.0
      %507 = vmatmul.mubr.f32.gmra.mxu0 %v425
      %v508 = vpop.f32.mrf.mxu0
      %v509 = vadd.f32 %v408, %v508
      %v510 = vpop.f32.mrf.mxu0
      %v511 = vadd.f32 %v410, %v510
      %512 = vmatprep.mubr.f32.mxu0 0.0
      %513 = vmatmul.mubr.f32.gmra.mxu0 %v428
      %v514 = vpop.f32.mrf.mxu0
      %v515 = vadd.f32 %v414, %v514
      %v516 = vpop.f32.mrf.mxu0
      %v517 = vadd.f32 %v416, %v516
      %518 = vdwg.mxu0
      %v519 = vld [vmem:[%s4] sm:$0xff]
      %v520 = vld [vmem:[%s4 + $0x8] sm:$0xff]
      %v521 = vld [vmem:[%s4 + $0x10] sm:$0xff]
      %v522 = vld [vmem:[%s4 + $0x18] sm:$0xff]
      %524 = vset.pattern.permute.xlu0 0
      %525 = vperm.xlu0 %524, %v519
      %v526 = vpop.permute.xlu0 %525
      %529 = vset.pattern.permute.xlu0 0
      %530 = vperm.xlu0 %529, %v520
      %v531 = vpop.permute.xlu0 %530
      %534 = vset.pattern.permute.xlu0 0
      %535 = vperm.xlu0 %534, %v521
      %v536 = vpop.permute.xlu0 %535
      %539 = vset.pattern.permute.xlu0 0
      %540 = vperm.xlu0 %539, %v522
      %v541 = vpop.permute.xlu0 %540
      %v543 = vadd.f32 %v497, %v526
      %v544 = vadd.f32 %v499, %v526
      %v545 = vadd.f32 %v503, %v531
      %v546 = vadd.f32 %v505, %v531
      %v547 = vadd.f32 %v509, %v536
      %v548 = vadd.f32 %v511, %v536
      %v549 = vadd.f32 %v515, %v541
      %v550 = vadd.f32 %v517, %v541
      %551 = vst [vmem:[%s298] sm:$0xff] %v543
      %552 = vst [vmem:[%s298 + $0x8] sm:$0xff] %v544
      %553 = vst [vmem:[%s298 + $0x10] sm:$0xff] %v545
      %554 = vst [vmem:[%s298 + $0x18] sm:$0xff] %v546
      %555 = vst [vmem:[%s298 + $0x20] sm:$0xff] %v547
      %556 = vst [vmem:[%s298 + $0x28] sm:$0xff] %v548
      %557 = vst [vmem:[%s298 + $0x30] sm:$0xff] %v549
      %558 = vst [vmem:[%s298 + $0x38] sm:$0xff] %v550
      %s559 = smul.u32 2, %s21
      %p560 = scmp.lt.s32.totalorder %s20, 1
      %s561 = scalar_select %p560, %s20, 1
      %p562 = scmp.lt.s32.totalorder %s559, 1
      %s563 = scalar_select %p562, %s559, 1
      %s564 = smul.addr %s561, 8
      %s565 = sadd.s32 %s563, %s564
      %s566 = smul.addr %s565, 8
      %s567 = scalar_lea.vmem %s5, %s566
      // Predicated region
      $region41: #{combine_layers_forward.3} parent=39 // pred_check
        %p568 = pneg %p167
      $region42: #{combine_layers_forward.3} parent=39 // pred_check_branch
        %570 = sbr.rel (%p568) target = $region44
      $region43: #{combine_layers_forward.3} parent=39 // pred_region
        %s571 = smul.u32 2, %s21
      $region44: #{combine_layers_forward.3} parent=39 // pred_fallthru
        _
    $region40: #{combine_layers_forward.3} parent=5 // pred_fallthru
      _
    %p572 = scmp.le.s32.totalorder 2, %s11
    // Predicated region
    $region45: #{combine_layers_forward.3} parent=5 // pred_check
      %p573 = pneg %p572
    $region46: #{combine_layers_forward.3} parent=5 // pred_check_branch
      %575 = sbr.rel (%p573) target = $region48
    $region47: #{combine_layers_forward.3} parent=5 // pred_region
      %s576 = ssub.s32 %s11, 2
      // Predicated region
      $region49: #{combine_layers_forward.3} parent=47 // pred_check
        %p577 = pneg %p173
      $region50: #{combine_layers_forward.3} parent=47 // pred_check_branch
        %579 = sbr.rel (%p577) target = $region52
      $region51: #{combine_layers_forward.3} parent=47 // pred_region
        %s580 = smul.u32 2, %s23
        %p581 = scmp.lt.s32.totalorder %s22, 1
        %s582 = scalar_select %p581, %s22, 1
        %p583 = scmp.lt.s32.totalorder %s580, 1
        %s584 = scalar_select %p583, %s580, 1
        %s585 = smul.addr %s582, 8
        %s586 = sadd.s32 %s584, %s585
        %s587 = smul.addr %s586, 8
        %s588 = scalar_lea.vmem %s5, %s587
      $region52: #{combine_layers_forward.3} parent=47 // pred_fallthru
        _
    $region48: #{combine_layers_forward.3} parent=5 // pred_fallthru
      _
  $region6: #{combine_layers_forward.3} parent=0 // loop_footer
    %s15 = sadd.s32 1, %s11
  $region7: #{combine_layers_forward.3} parent=0 // loop_footer_branch
    %10 = sbr.rel target = $region3
  $region8: #{combine_layers_forward.3} parent=0 // loop_exit
    _

</llo_original>
